<compile_context>
chip_gen: v7x
topology: tpu7x:2x2x1
jax: 0.10.0
libtpu: 0.0.40
codegen_flags: <defaults>
</compile_context>

<pallas_src>
from functools import partial

import jax
import jax.numpy as jnp
from jax.experimental import pallas as pl
from jax.experimental.pallas import tpu as pltpu


# -----------------------------------------------------------------------------
# Kernel: one batch tile of  out = x @ Qt   (Qt = Q^T, shape (D, 512))
# -----------------------------------------------------------------------------
def _direction_kernel(x_ref, qt_ref, o_ref):
    # x_ref: (TB, D) in the caller's dtype (usually f32); qt_ref: (D, 512) in
    # the compute dtype (bf16 by default); o_ref: (TB, 512) in out_dtype.
    # Cast the LHS tile in VMEM (avoids a separate XLA cast pass over x).
    x = x_ref[...].astype(qt_ref.dtype)
    o_ref[...] = jnp.dot(
        x, qt_ref[...], preferred_element_type=jnp.float32
    ).astype(o_ref.dtype)


# Below this batch size, pallas_call launch + DMA fixed cost exceeds the
# compute; let XLA fuse a plain dot (cast + dot + consumer) instead.
_SMALL_B_THRESHOLD = 256


@partial(jax.jit, static_argnames=("block_b", "out_dtype", "force_pallas"))
def direction_matmul(x, qt, *, block_b=1024, out_dtype=jnp.bfloat16,
                     force_pallas=False):
    """out = x @ qt, with qt = Q^T of shape (motion_dim, 512)."""
    B, D = x.shape
    N = qt.shape[1]

    if B < _SMALL_B_THRESHOLD and not force_pallas:
        # Tiny-batch path: MXU would be >95% idle; a plain XLA dot (fusible
        # into the consumer) is cheaper than a kernel launch.
        return jnp.dot(
            x.astype(qt.dtype), qt, preferred_element_type=jnp.float32
        ).astype(out_dtype)

    tb = min(block_b, B)
    if tb < B:
        # Keep tiled batch blocks sublane-aligned (multiple of 8); the ragged
        # final block is masked by Pallas, no pad / slice needed.
        tb = max(8, (tb // 8) * 8)
    grid = (pl.cdiv(B, tb),)

    bytes_accessed = (
        B * D * x.dtype.itemsize              # x read
        + D * N * qt.dtype.itemsize           # Qt read (resident, counted once)
        + B * N * jnp.dtype(out_dtype).itemsize  # output write
    )

    return pl.pallas_call(
        _direction_kernel,
        out_shape=jax.ShapeDtypeStruct((B, N), out_dtype),
        grid=grid,
        in_specs=[
            pl.BlockSpec((tb, D), lambda i: (i, 0)),   # batch-tiled LHS
            pl.BlockSpec((D, N), lambda i: (0, 0)),    # Qt resident across tiles
        ],
        out_specs=pl.BlockSpec((tb, N), lambda i: (i, 0)),
        compiler_params=pltpu.CompilerParams(
            # Independent batch tiles -> shard grid steps across TCs (v7x).
            dimension_semantics=("parallel",),
        ),
        cost_estimate=pl.CostEstimate(
            flops=2 * B * D * N,
            transcendentals=0,
            bytes_accessed=bytes_accessed,
        ),
    )(x, qt)


# -----------------------------------------------------------------------------
# Module wrapper: QR is computed ONCE per weight update, not per forward call.
# -----------------------------------------------------------------------------
def prepare_direction(weight, compute_dtype=jnp.bfloat16):
    """Compute Q (f32) and Q^T (compute_dtype) once per weight update."""
    w = weight.astype(jnp.float32) + 1e-8      # pin QR to f32
    q, _r = jnp.linalg.qr(w)                   # reduced QR, Q: (512, D)
    qt = jnp.asarray(q.T, dtype=compute_dtype)  # (D, 512), lane-dense RHS
    return q, qt


class Direction:
    """JAX/Pallas equivalent of the PyTorch Direction module."""

    def __init__(self, weight, compute_dtype=jnp.bfloat16):
        # Use compute_dtype=jnp.float32 for full f32 parity with the torch op.
        self.Q, self.Qt = prepare_direction(weight, compute_dtype)

    def __call__(self, x, **kwargs):
        if x is None:
            return self.Q
        return direction_matmul(x, self.Qt, **kwargs)


if __name__ == "__main__":
    motion_dim = 32
    batch = 2

    key = jax.random.PRNGKey(0)
    k_w, k_x, k_xl = jax.random.split(key, 3)

    weight = jax.random.normal(k_w, (512, motion_dim), dtype=jnp.float32)
    x = jax.random.normal(k_x, (batch, motion_dim), dtype=jnp.float32)

    model = Direction(weight)

    # f32 reference (matches torch semantics up to QR column-sign convention).
    Q_ref, _ = jnp.linalg.qr(weight.astype(jnp.float32) + 1e-8)
    ref_small = x @ Q_ref.T

    # 1) Small-batch shape, forced through the Pallas kernel (single tile,
    #    block = full array -> no (8,128) issue).
    out_small = jax.block_until_ready(model(x, force_pallas=True))
    assert out_small.shape == (batch, 512), out_small.shape
    # bf16 operands + bf16 output (f32 accumulation) -> loose tolerance.
    assert jnp.allclose(out_small.astype(jnp.float32), ref_small,
                        atol=3e-2, rtol=3e-2), \
        "small-batch kernel mismatch vs reference"

    # 2) Larger batch: exercises batch tiling, ragged final block masking,
    #    and the parallel grid (B=1300, tb=512 -> 3 steps, last block 276 rows).
    B_large = 1300
    x_large = jax.random.normal(k_xl, (B_large, motion_dim), dtype=jnp.float32)
    out_large = jax.block_until_ready(model(x_large, block_b=512))
    assert out_large.shape == (B_large, 512), out_large.shape
    ref_large = x_large @ Q_ref.T
    assert jnp.allclose(out_large.astype(jnp.float32), ref_large,
                        atol=3e-2, rtol=3e-2), \
        "tiled kernel mismatch vs reference"

    # 3) f32-output opt-in path through the kernel still correct.
    out_f32 = jax.block_until_ready(
        model(x_large, block_b=512, out_dtype=jnp.float32))
    assert out_f32.dtype == jnp.float32
    assert jnp.allclose(out_f32, ref_large, atol=3e-2, rtol=3e-2)

    # 4) Small-batch dispatch path (no kernel, plain XLA dot) still correct.
    out_dispatch = jax.block_until_ready(model(x))
    assert jnp.allclose(out_dispatch.astype(jnp.float32), ref_small,
                        atol=3e-2, rtol=3e-2)

    # 5) input is None branch returns Q directly.
    q_out = jax.block_until_ready(model(None))
    assert q_out.shape == (512, motion_dim)

    print("KERNEL_OK")
</pallas_src>

<mosaic_0001>
module attributes {stable_mosaic.version = 11 : i64} {
  func.func @_direction_kernel(%arg0: i32, %arg1: memref<2x32xf32, #tpu.memory_space<vmem>>, %arg2: memref<32x512xbf16, #tpu.memory_space<vmem>>, %arg3: memref<2x512xbf16, #tpu.memory_space<vmem>>) attributes {dimension_semantics = [#tpu.dimension_semantics<parallel>], iteration_bounds = array<i64: 1>, scalar_prefetch = 0 : i64, scratch_operands = 0 : i64, tpu.core_type = #tpu.core_type<tc>, window_params = [{transform_indices = @transform_0, window_bounds = array<i64: 2, 32>}, {pipeline_mode = #tpu.pipeline_mode<synchronous>, transform_indices = @transform_1, window_bounds = array<i64: 32, 512>}, {transform_indices = @transform_2, window_bounds = array<i64: 2, 512>}]} {
    %c0 = arith.constant 0 : index
    %c0_0 = arith.constant 0 : index
    %0 = vector.load %arg1[%c0, %c0_0] : memref<2x32xf32, #tpu.memory_space<vmem>>, vector<2x32xf32>
    %1 = arith.truncf %0 : vector<2x32xf32> to vector<2x32xbf16>
    %c0_1 = arith.constant 0 : index
    %c0_2 = arith.constant 0 : index
    %2 = vector.load %arg2[%c0_1, %c0_2] : memref<32x512xbf16, #tpu.memory_space<vmem>>, vector<32x512xbf16>
    %cst = arith.constant dense<0.000000e+00> : vector<2x512xf32>
    %3 = tpu.matmul %1, %2, %cst {dimension_numbers = #tpu.dot_dimension_numbers<[1], [0], [0], [1], [0, 0, 1, 1], [], []>} : vector<2x32xbf16>, vector<32x512xbf16>, vector<2x512xf32> -> vector<2x512xf32>
    %4 = arith.truncf %3 : vector<2x512xf32> to vector<2x512xbf16>
    %c0_3 = arith.constant 0 : index
    %c0_4 = arith.constant 0 : index
    %5 = vector.load %arg3[%c0_3, %c0_4] : memref<2x512xbf16, #tpu.memory_space<vmem>>, vector<2x512xbf16>
    tpu.vector_store %arg3[%c0_3, %c0_4], %4 {strides = array<i32>} : memref<2x512xbf16, #tpu.memory_space<vmem>>, vector<2x512xbf16>,
    return
  }
  func.func @transform_0(%arg0: i32) -> (i32, i32) {
    %c0_i32 = arith.constant 0 : i32
    %c0_i32_0 = arith.constant 0 : i32
    return %arg0, %c0_i32 : i32, i32
  }
  func.func @transform_1(%arg0: i32) -> (i32, i32) {
    %c0_i32 = arith.constant 0 : i32
    %c0_i32_0 = arith.constant 0 : i32
    %c0_i32_1 = arith.constant 0 : i32
    return %c0_i32, %c0_i32_0 : i32, i32
  }
  func.func @transform_2(%arg0: i32) -> (i32, i32) {
    %c0_i32 = arith.constant 0 : i32
    %c0_i32_0 = arith.constant 0 : i32
    return %arg0, %c0_i32 : i32, i32
  }
}

</mosaic_0001>

<llo_original>
// kernel: direction_matmul.1
$region0: #{direction_matmul.1}
  #allocation0 [shape = 'u32[]', space=smem, size = 0x4, offset = 0x4, fixed_abs, tag = 'smem constant byte address 0x4 - core index']
  #allocation1 [shape = 'u32[144,128]{1,0:T(1,128)}', space=vmem, size = 0x12000, scoped, tag = 'internal scratch']
  %s0 = inlined_call_operand.hbm [shape: f32[2,32], index: 0, kind: input, shape index: {}]
  %s1 = inlined_call_operand.hbm [shape: bf16[32,512], index: 1, kind: input, shape index: {}]
  %s2 = inlined_call_operand.hbm [shape: bf16[2,512], index: 2, kind: output, shape index: {}]
  %s3 = sld [smem:[#allocation0]]
  $region26: #{direction_matmul.1} parent=0
    _
  %s5 = ssub.s32 1, %s3
  %s6 = scalar_select 0, %s5, %s3
  $region1: #{direction_matmul.1} parent=0
    #allocation2 [shape = 'u8[1024]{0}', space=vmem, size = 0x400, scoped, tag = 'input window, operand 0, single buffered']
    #allocation3 [shape = 's32[1]{0}', space=sflag, size = 0x4, scoped, tag = 'scoped memory for direction_matmul.1']
    #allocation4 [shape = 's32[1]{0}', space=sflag, size = 0x4, scoped, tag = 'scoped memory for direction_matmul.1']
    #allocation5 [shape = 'u8[32768]{0}', space=vmem, size = 0x8000, scoped, tag = 'input window, operand 1, single buffered']
    #allocation6 [shape = 's32[1]{0}', space=sflag, size = 0x4, scoped, tag = 'scoped memory for direction_matmul.1']
    #allocation7 [shape = 'u8[2048]{0}', space=vmem, size = 0x800, scoped, tag = 'output window, operand 0, single buffered']
    %7 = vsyncpa [#allocation3], 0
    %8 = vsyncpa [#allocation6], 0
    %9 = vsyncpa [#allocation4], 0
    // Predicated region
    $region2: #{direction_matmul.1} parent=1 // pred_check
      _
    $region3: #{direction_matmul.1} parent=1 // pred_check_branch
      %11 = sbr.rel (0) target = $region5
    $region4: #{direction_matmul.1} parent=1 // pred_region
      %s13 = ssub.s32 32, 32
      %14 = vsyncadd [#allocation3], %s13
      %s16 = sshll.u32 [#allocation2], 4
      %s17 = int_to_ptr.vmem [resolvable:$true] %s16
      %19 = dma.hbm_to_vmem [thread:$0]  %s0, 32, %s17, [#allocation3]
    $region5: #{direction_matmul.1} parent=1 // pred_fallthru
      _
    // Predicated region
    $region6: #{direction_matmul.1} parent=1 // pred_check
      _
    $region7: #{direction_matmul.1} parent=1 // pred_check_branch
      %21 = sbr.rel (0) target = $region9
    $region8: #{direction_matmul.1} parent=1 // pred_region
      %s23 = ssub.s32 1024, 1024
      %24 = vsyncadd [#allocation6], %s23
      %s25 = sshll.u32 [#allocation5], 4
      %s26 = int_to_ptr.vmem [resolvable:$true] %s25
      %31 = dma.hbm_to_vmem [thread:$0]  %s1, 1024, %s26, [#allocation6], 256, 256, 16
    $region9: #{direction_matmul.1} parent=1 // pred_fallthru
      _
    // Predicated region
    $region10: #{direction_matmul.1} parent=1 // pred_check
      _
    $region11: #{direction_matmul.1} parent=1 // pred_check_branch
      %33 = sbr.rel (0) target = $region13
    $region12: #{direction_matmul.1} parent=1 // pred_region
      %34 = dma.done [#allocation3], 32
    $region13: #{direction_matmul.1} parent=1 // pred_fallthru
      _
    // Predicated region
    $region14: #{direction_matmul.1} parent=1 // pred_check
      _
    $region15: #{direction_matmul.1} parent=1 // pred_check_branch
      %36 = sbr.rel (0) target = $region17
    $region16: #{direction_matmul.1} parent=1 // pred_region
      %37 = dma.done [#allocation6], 1024
    $region17: #{direction_matmul.1} parent=1 // pred_fallthru
      _
    %v39 = vld [vmem:[#allocation2] sm:$0x3]
    %v40 = vpack.c.bf16 %v39, %v39
    %v41 = vld [vmem:[#allocation5] sm:$0xff]
    %v42 = vld [vmem:[#allocation5 + $0x8] sm:$0xff]
    %v43 = vld [vmem:[#allocation5 + $0x10] sm:$0xff]
    %v44 = vld [vmem:[#allocation5 + $0x18] sm:$0xff]
    %v45 = vld [vmem:[#allocation5 + $0x20] sm:$0xff]
    %v46 = vld [vmem:[#allocation5 + $0x28] sm:$0xff]
    %v47 = vld [vmem:[#allocation5 + $0x30] sm:$0xff]
    %v48 = vld [vmem:[#allocation5 + $0x38] sm:$0xff]
    %v57 = vunpack.c.l.b16 %v41
    %v58 = vunpack.c.h.b16 %v41
    %v59 = vunpack.c.l.b16 %v42
    %v60 = vunpack.c.h.b16 %v42
    %v61 = vunpack.c.l.b16 %v43
    %v62 = vunpack.c.h.b16 %v43
    %v63 = vunpack.c.l.b16 %v44
    %v64 = vunpack.c.h.b16 %v44
    %v65 = vunpack.c.l.b16 %v45
    %v66 = vunpack.c.h.b16 %v45
    %v67 = vunpack.c.l.b16 %v46
    %v68 = vunpack.c.h.b16 %v46
    %v69 = vunpack.c.l.b16 %v47
    %v70 = vunpack.c.h.b16 %v47
    %v71 = vunpack.c.l.b16 %v48
    %v72 = vunpack.c.h.b16 %v48
    %v73 = vpack.c.b16 %v61, %v57
    %v74 = vpack.c.b16 %v62, %v58
    %v75 = vpack.c.b16 %v63, %v59
    %v76 = vpack.c.b16 %v64, %v60
    %v77 = vpack.c.b16 %v69, %v65
    %v78 = vpack.c.b16 %v70, %v66
    %v79 = vpack.c.b16 %v71, %v67
    %v80 = vpack.c.b16 %v72, %v68
    %vm89 = vcmask 261120
    %v91 = vsel %vm89, %v40, 0
    %93 = vmatprep.subr.bf16.mxu0 %v74
    %94 = vmatpush1.bf16.msra.mxu0 %v73
    %95 = vmatprep.subr.bf16.mxu0 %v78
    %96 = vmatpush1.bf16.msra.mxu0 %v77
    %97 = vmatprep.subr.bf16.mxu0 0
    %98 = vmatpush1.bf16.msra.mxu0 0
    %99 = vmatprep.subr.bf16.mxu0 0
    %100 = vmatpush1.bf16.msra.mxu0 0
    %101 = vmatprep.subr.bf16.mxu0 0
    %102 = vmatpush1.bf16.msra.mxu0 0
    %103 = vmatprep.subr.bf16.mxu0 0
    %104 = vmatpush1.bf16.msra.mxu0 0
    %105 = vmatprep.subr.bf16.mxu0 0
    %106 = vmatpush1.bf16.msra.mxu0 0
    %107 = vmatprep.subr.bf16.mxu0 0
    %108 = vmatpush1.bf16.msra.mxu0 0
    %109 = vmatprep.subr.bf16.mxu0 0
    %110 = vmatpush1.bf16.msra.mxu0 0
    %111 = vmatprep.subr.bf16.mxu0 0
    %112 = vmatpush1.bf16.msra.mxu0 0
    %113 = vmatprep.subr.bf16.mxu0 0
    %114 = vmatpush1.bf16.msra.mxu0 0
    %115 = vmatprep.subr.bf16.mxu0 0
    %116 = vmatpush1.bf16.msra.mxu0 0
    %117 = vmatprep.subr.bf16.mxu0 0
    %118 = vmatpush1.bf16.msra.mxu0 0
    %119 = vmatprep.subr.bf16.mxu0 0
    %120 = vmatpush1.bf16.msra.mxu0 0
    %121 = vmatprep.subr.bf16.mxu0 0
    %122 = vmatpush1.bf16.msra.mxu0 0
    %123 = vmatprep.subr.bf16.mxu0 0
    %124 = vmatpush1.bf16.msra.mxu0 0
    %125 = vmatprep.mubr.bf16.mxu0 0
    %126 = vmatmul.mubr.bf16.gmra.mrb[0].mxu0 %v91
    %v127 = vpop.f32.mrb[0].mxu0
    %v128 = vadd.f32 0.0, %v127
    %v129 = vpop.f32.mrb[0].mxu0
    %v130 = vadd.f32 0.0, %v129
    %v131 = vpop.f32.mrb[0].mxu0
    %v132 = vpop.f32.mrb[0].mxu0
    %133 = vdwg.mxu0
    %134 = vmatprep.subr.bf16.mxu0 %v76
    %135 = vmatpush1.bf16.msra.mxu0 %v75
    %136 = vmatprep.subr.bf16.mxu0 %v80
    %137 = vmatpush1.bf16.msra.mxu0 %v79
    %138 = vmatprep.subr.bf16.mxu0 0
    %139 = vmatpush1.bf16.msra.mxu0 0
    %140 = vmatprep.subr.bf16.mxu0 0
    %141 = vmatpush1.bf16.msra.mxu0 0
    %142 = vmatprep.subr.bf16.mxu0 0
    %143 = vmatpush1.bf16.msra.mxu0 0
    %144 = vmatprep.subr.bf16.mxu0 0
    %145 = vmatpush1.bf16.msra.mxu0 0
    %146 = vmatprep.subr.bf16.mxu0 0
    %147 = vmatpush1.bf16.msra.mxu0 0
    %148 = vmatprep.subr.bf16.mxu0 0
    %149 = vmatpush1.bf16.msra.mxu0 0
    %150 = vmatprep.subr.bf16.mxu0 0
    %151 = vmatpush1.bf16.msra.mxu0 0
    %152 = vmatprep.subr.bf16.mxu0 0
    %153 = vmatpush1.bf16.msra.mxu0 0
    %154 = vmatprep.subr.bf16.mxu0 0
    %155 = vmatpush1.bf16.msra.mxu0 0
    %156 = vmatprep.subr.bf16.mxu0 0
    %157 = vmatpush1.bf16.msra.mxu0 0
    %158 = vmatprep.subr.bf16.mxu0 0
    %159 = vmatpush1.bf16.msra.mxu0 0
    %160 = vmatprep.subr.bf16.mxu0 0
    %161 = vmatpush1.bf16.msra.mxu0 0
    %162 = vmatprep.subr.bf16.mxu0 0
    %163 = vmatpush1.bf16.msra.mxu0 0
    %164 = vmatprep.subr.bf16.mxu0 0
    %165 = vmatpush1.bf16.msra.mxu0 0
    %166 = vmatprep.mubr.bf16.mxu0 0
    %167 = vmatmul.mubr.bf16.gmra.mrb[0].mxu0 %v91
    %v168 = vpop.f32.mrb[0].mxu0
    %v169 = vadd.f32 0.0, %v168
    %v170 = vpop.f32.mrb[0].mxu0
    %v171 = vadd.f32 0.0, %v170
    %v172 = vpop.f32.mrb[0].mxu0
    %v173 = vpop.f32.mrb[0].mxu0
    %174 = vdwg.mxu0
    %v175 = vpack.c.bf16 %v128, %v128
    %v176 = vpack.c.bf16 %v130, %v130
    %v177 = vpack.c.bf16 %v169, %v169
    %v178 = vpack.c.bf16 %v171, %v171
    %v183 = vcombine.low %v175, %v176
    %v184 = vcombine.low %v177, %v178
    %v186 = vunpack.c.l.s4 1966171168
    %v187 = vunpack.c.0.s8 %v186
    %v188 = vlaneseq
    %v189 = vshrl.u32 %v188, 7
    %v190 = vsub.s32 %v187, %v189
    %v191 = vrot.slane %v183, %v190
    %v193 = vunpack.c.l.s4 1966171168
    %v194 = vunpack.c.0.s8 %v193
    %v195 = vlaneseq
    %v196 = vshrl.u32 %v195, 7
    %v197 = vsub.s32 %v194, %v196
    %v198 = vrot.slane %v184, %v197
    %v199 = vcombine.low %v191, %v198
    %v201 = vunpack.c.l.s4 1966171168
    %v202 = vunpack.c.0.s8 %v201
    %v203 = vlaneseq
    %v204 = vshrl.u32 %v203, 7
    %v205 = vsub.s32 %v202, %v204
    %v206 = vrot.slane %v199, %v205
    %208 = vst [vmem:[#allocation7] sm:$0xf] %v206
    // Predicated region
    $region18: #{direction_matmul.1} parent=1 // pred_check
      _
    $region19: #{direction_matmul.1} parent=1 // pred_check_branch
      %210 = sbr.rel (0) target = $region21
    $region20: #{direction_matmul.1} parent=1 // pred_region
      %s212 = ssub.s32 64, 64
      %213 = vsyncadd [#allocation4], %s212
      %s215 = sshll.u32 [#allocation7], 4
      %s216 = int_to_ptr.vmem [resolvable:$true] %s215
      %218 = dma.vmem_to_hbm [thread:$0]  %s216, 64, %s2, [#allocation4]
    $region21: #{direction_matmul.1} parent=1 // pred_fallthru
      _
    // Predicated region
    $region22: #{direction_matmul.1} parent=1 // pred_check
      _
    $region23: #{direction_matmul.1} parent=1 // pred_check_branch
      %220 = sbr.rel (0) target = $region25
    $region24: #{direction_matmul.1} parent=1 // pred_region
      %221 = dma.done [#allocation4], 64
    $region25: #{direction_matmul.1} parent=1 // pred_fallthru
      _
    %222 = vsyncpa [#allocation3], 1
    %223 = vsyncpa [#allocation6], 1
    %224 = vsyncpa [#allocation4], 1

</llo_original>
